<compile_context>
chip_gen: v7x
topology: tpu7x:2x2x1
jax: 0.10.0
libtpu: 0.0.40
codegen_flags: <defaults>
</compile_context>

<pallas_src>
import math
import functools

import jax
import jax.numpy as jnp
from jax.experimental import pallas as pl
from jax.experimental.pallas import tpu as pltpu


def _fused_attn_kernel(x_ref, w_ref, b_ref, mask_ref, o_ref, *,
                       batch, seq_len, num_heads, head_dim):
    # x: (B*T, H) bf16   w: (H, 3H) bf16   b: (1, 3H) f32   mask: (B, T) f32   o: (B*T, H)
    B, T, d = batch, seq_len, head_dim
    H = num_heads * head_dim

    x = x_ref[...]                    # (B*T, H) bf16
    w = w_ref[...]                    # (H, 3H) bf16
    b_qkv = b_ref[...]                # (1, 3H) f32
    amask = mask_ref[...]             # (B, T) f32 additive padding mask (per key position)

    # Fused QKV projection for all batches in ONE lane-dense MXU matmul (f32 accumulation).
    qkv = jnp.dot(x, w, preferred_element_type=jnp.float32) + b_qkv        # (B*T, 3H) f32

    # Fold 1/sqrt(d) into q; downcast Q/K/V to bf16 once. Softmax math stays f32.
    scale = jnp.float32(1.0 / math.sqrt(d))
    q_all = (qkv[:, :H] * scale).astype(jnp.bfloat16)                      # (B*T, H)
    k_all = qkv[:, H:2 * H].astype(jnp.bfloat16)
    v_all = qkv[:, 2 * H:3 * H].astype(jnp.bfloat16)

    # Causal predicate (bool); no full (T, T) f32 bias tensor is materialized.
    row = jax.lax.broadcasted_iota(jnp.int32, (T, T), 0)
    col = jax.lax.broadcasted_iota(jnp.int32, (T, T), 1)
    causal_ok = col <= row
    neg_big = jnp.float32(-1e30)      # finite large negative (diagonal is never masked)

    ctx_rows = []
    for bi in range(B):               # static unroll; B and num_heads are tiny & static here.
        r0 = bi * T
        amask_b = amask[bi:bi + 1, :]                                      # (1, T) broadcast
        head_ctx = []
        for h in range(num_heads):
            c0 = h * d
            q = q_all[r0:r0 + T, c0:c0 + d]                                # (T, d) bf16
            k = k_all[r0:r0 + T, c0:c0 + d]
            v = v_all[r0:r0 + T, c0:c0 + d]

            # QK^T without an explicit transpose: contract the feature axis of both operands.
            s = jax.lax.dot_general(q, k, (((1,), (1,)), ((), ())),
                                    preferred_element_type=jnp.float32)   # (T, T) f32
            s = jnp.where(causal_ok, s, neg_big) + amask_b

            m = jnp.max(s, axis=-1, keepdims=True)
            e = jnp.exp(s - m)
            denom = jnp.sum(e, axis=-1, keepdims=True)
            p = e * pl.reciprocal(denom, approx=True)                      # EUP vrcp

            # dropout(attention_probs): identity in eval mode.

            head_ctx.append(jnp.dot(p.astype(jnp.bfloat16), v,
                                    preferred_element_type=jnp.float32))   # (T, d) f32
        ctx_rows.append(jnp.concatenate(head_ctx, axis=-1))                # (T, H)

    # One dense store of the whole (B*T, H) output slab (no masked narrow column stores).
    o_ref[...] = jnp.concatenate(ctx_rows, axis=0).astype(o_ref.dtype)


def causal_self_attention(hidden_states, attention_mask, params, num_heads):
    """hidden_states: [B, T, H], attention_mask: [B, 1, 1, T] (additive) -> [B, T, H]."""
    B, T, H = hidden_states.shape
    d = H // num_heads

    # Glue: fuse Q/K/V weights into [H, 3H] (x @ W layout) and biases into [1, 3H].
    w_qkv = jnp.concatenate(
        [params["wq"], params["wk"], params["wv"]], axis=1).astype(jnp.bfloat16)   # (H, 3H)
    b_qkv = jnp.concatenate(
        [params["bq"], params["bk"], params["bv"]], axis=0).reshape(1, 3 * H).astype(jnp.float32)
    amask = attention_mask.reshape(B, T).astype(jnp.float32)
    x2d = hidden_states.reshape(B * T, H).astype(jnp.bfloat16)

    out2d = pl.pallas_call(
        functools.partial(_fused_attn_kernel, batch=B, seq_len=T,
                          num_heads=num_heads, head_dim=d),
        out_shape=jax.ShapeDtypeStruct((B * T, H), hidden_states.dtype),
        # grid=() -> kernel runs exactly once; every operand is a full, VMEM-resident block.
        in_specs=[
            pl.BlockSpec((B * T, H), lambda: (0, 0)),       # activations (all batches)
            pl.BlockSpec((H, 3 * H), lambda: (0, 0)),       # fused QKV weight
            pl.BlockSpec((1, 3 * H), lambda: (0, 0)),       # fused QKV bias
            pl.BlockSpec((B, T), lambda: (0, 0)),           # additive padding mask
        ],
        out_specs=pl.BlockSpec((B * T, H), lambda: (0, 0)),  # lane-dense output slab
    )(x2d, w_qkv, b_qkv, amask)

    return out2d.reshape(B, T, H)


def reference(hidden_states, attention_mask, params, num_heads):
    """Pure-JAX f32 reference mirroring the PyTorch forward (eval mode)."""
    B, T, H = hidden_states.shape
    d = H // num_heads

    def proj(w, b):
        p = hidden_states @ w + b                                    # [B, T, H]
        return p.reshape(B, T, num_heads, d).transpose(0, 2, 1, 3)   # [B, h, T, d]

    q = proj(params["wq"], params["bq"])
    k = proj(params["wk"], params["bk"])
    v = proj(params["wv"], params["bv"])

    scores = jnp.einsum("bhqd,bhkd->bhqk", q, k) / math.sqrt(d)
    causal = jnp.tril(jnp.ones((T, T), dtype=bool))
    scores = jnp.where(causal[None, None], scores, -jnp.inf)
    scores = scores + attention_mask  # [B,1,1,T] broadcasts
    probs = jax.nn.softmax(scores, axis=-1)
    ctx = jnp.einsum("bhqk,bhkd->bhqd", probs, v)
    return ctx.transpose(0, 2, 1, 3).reshape(B, T, H)


if __name__ == "__main__":
    # config: hidden_size=32, num_attention_heads=4 -> head_size=8; bs=2, seq_len=8
    B, T, H, NH = 2, 8, 32, 4

    key = jax.random.PRNGKey(0)
    k1, k2, k3, k4, k5, k6, k7, _ = jax.random.split(key, 8)

    # Deterministic synthetic params. Weights stored in x@W layout ([in, out]).
    params = {
        "wq": jax.random.normal(k1, (H, H), jnp.float32) * 0.1,
        "bq": jax.random.normal(k2, (H,), jnp.float32) * 0.1,
        "wk": jax.random.normal(k3, (H, H), jnp.float32) * 0.1,
        "bk": jax.random.normal(k4, (H,), jnp.float32) * 0.1,
        "wv": jax.random.normal(k5, (H, H), jnp.float32) * 0.1,
        "bv": jax.random.normal(k6, (H,), jnp.float32) * 0.1,
    }

    hidden_states = jax.random.normal(k7, (B, T, H), jnp.float32)
    # additive attention mask [B, 1, 1, T]: mask out the last 2 tokens of batch 1
    pad = jnp.zeros((B, T), jnp.float32).at[1, -2:].set(-10000.0)
    attention_mask = pad.reshape(B, 1, 1, T)

    out = causal_self_attention(hidden_states, attention_mask, params, NH)
    out = jax.block_until_ready(out)

    ref = reference(hidden_states, attention_mask, params, NH)
    assert out.shape == (B, T, H)
    # bf16 MXU operands + approx reciprocal vs. pure-f32 reference -> loosened tolerance.
    assert jnp.allclose(out, ref, atol=2e-2, rtol=2e-2), "mismatch vs reference"

    print("KERNEL_OK")
</pallas_src>

<mosaic_0001>
module attributes {stable_mosaic.version = 11 : i64} {
  func.func @_fused_attn_kernel(%arg0: memref<16x32xbf16, #tpu.memory_space<vmem>>, %arg1: memref<32x96xbf16, #tpu.memory_space<vmem>>, %arg2: memref<1x96xf32, #tpu.memory_space<vmem>>, %arg3: memref<2x8xf32, #tpu.memory_space<vmem>>, %arg4: memref<16x32xf32, #tpu.memory_space<vmem>>) attributes {dimension_semantics = [], scalar_prefetch = 0 : i64, scratch_operands = 0 : i64, tpu.core_type = #tpu.core_type<tc>} {
    %c0 = arith.constant 0 : index
    %c0_0 = arith.constant 0 : index
    %0 = vector.load %arg0[%c0, %c0_0] : memref<16x32xbf16, #tpu.memory_space<vmem>>, vector<16x32xbf16>
    %c0_1 = arith.constant 0 : index
    %c0_2 = arith.constant 0 : index
    %1 = vector.load %arg1[%c0_1, %c0_2] : memref<32x96xbf16, #tpu.memory_space<vmem>>, vector<32x96xbf16>
    %c0_3 = arith.constant 0 : index
    %c0_4 = arith.constant 0 : index
    %2 = vector.load %arg2[%c0_3, %c0_4] : memref<1x96xf32, #tpu.memory_space<vmem>>, vector<1x96xf32>
    %c0_5 = arith.constant 0 : index
    %c0_6 = arith.constant 0 : index
    %3 = vector.load %arg3[%c0_5, %c0_6] : memref<2x8xf32, #tpu.memory_space<vmem>>, vector<2x8xf32>
    %cst = arith.constant dense<0.000000e+00> : vector<16x96xf32>
    %4 = tpu.matmul %0, %1, %cst {dimension_numbers = #tpu.dot_dimension_numbers<[1], [0], [0], [1], [0, 0, 1, 1], [], []>} : vector<16x32xbf16>, vector<32x96xbf16>, vector<16x96xf32> -> vector<16x96xf32>
    %5 = vector.broadcast %2 : vector<1x96xf32> to vector<16x96xf32>
    %6 = arith.addf %4, %5 : vector<16x96xf32>
    %7 = vector.extract_strided_slice %6 {offsets = [0, 0], sizes = [16, 32], strides = [1, 1]} : vector<16x96xf32> to vector<16x32xf32>
    %cst_7 = arith.constant 0.353553385 : f32
    %8 = vector.broadcast %cst_7 : f32 to vector<16x32xf32>
    %9 = arith.mulf %7, %8 : vector<16x32xf32>
    %10 = arith.truncf %9 : vector<16x32xf32> to vector<16x32xbf16>
    %11 = vector.extract_strided_slice %6 {offsets = [0, 32], sizes = [16, 32], strides = [1, 1]} : vector<16x96xf32> to vector<16x32xf32>
    %12 = arith.truncf %11 : vector<16x32xf32> to vector<16x32xbf16>
    %13 = vector.extract_strided_slice %6 {offsets = [0, 64], sizes = [16, 32], strides = [1, 1]} : vector<16x96xf32> to vector<16x32xf32>
    %14 = arith.truncf %13 : vector<16x32xf32> to vector<16x32xbf16>
    %15 = tpu.iota {dimensions = array<i32: 0>} : vector<8x8xi32>
    %16 = tpu.iota {dimensions = array<i32: 1>} : vector<8x8xi32>
    %17 = arith.cmpi sle, %16, %15 : vector<8x8xi32>
    %18 = vector.extract_strided_slice %3 {offsets = [0, 0], sizes = [1, 8], strides = [1, 1]} : vector<2x8xf32> to vector<1x8xf32>
    %19 = vector.extract_strided_slice %10 {offsets = [0, 0], sizes = [8, 8], strides = [1, 1]} : vector<16x32xbf16> to vector<8x8xbf16>
    %20 = vector.extract_strided_slice %12 {offsets = [0, 0], sizes = [8, 8], strides = [1, 1]} : vector<16x32xbf16> to vector<8x8xbf16>
    %21 = vector.extract_strided_slice %14 {offsets = [0, 0], sizes = [8, 8], strides = [1, 1]} : vector<16x32xbf16> to vector<8x8xbf16>
    %cst_8 = arith.constant dense<0.000000e+00> : vector<8x8xf32>
    %22 = tpu.matmul %19, %20, %cst_8 {dimension_numbers = #tpu.dot_dimension_numbers<[1], [1], [0], [0], [0, 0, 1, 0], [], []>} : vector<8x8xbf16>, vector<8x8xbf16>, vector<8x8xf32> -> vector<8x8xf32>
    %cst_9 = arith.constant -1.000000e+30 : f32
    %23 = vector.broadcast %cst_9 : f32 to vector<8x8xf32>
    %24 = arith.select %17, %22, %23 : vector<8x8xi1>, vector<8x8xf32>
    %25 = vector.broadcast %18 : vector<1x8xf32> to vector<8x8xf32>
    %26 = arith.addf %24, %25 : vector<8x8xf32>
    %cst_10 = arith.constant dense<0xFF800000> : vector<8xf32>
    %27 = vector.multi_reduction <maximumf>, %26, %cst_10 [1] : vector<8x8xf32> to vector<8xf32>
    %28 = vector.shape_cast %27 : vector<8xf32> to vector<8x1xf32>
    %29 = vector.broadcast %28 : vector<8x1xf32> to vector<8x8xf32>
    %30 = arith.subf %26, %29 : vector<8x8xf32>
    %31 = math.exp %30 : vector<8x8xf32>
    %cst_11 = arith.constant dense<0.000000e+00> : vector<8xf32>
    %32 = vector.multi_reduction <add>, %31, %cst_11 [1] : vector<8x8xf32> to vector<8xf32>
    %33 = vector.shape_cast %32 : vector<8xf32> to vector<8x1xf32>
    %34 = tpu.reciprocal %33 {approx = true} : vector<8x1xf32> -> vector<8x1xf32>
    %35 = vector.broadcast %34 : vector<8x1xf32> to vector<8x8xf32>
    %36 = arith.mulf %31, %35 : vector<8x8xf32>
    %37 = arith.truncf %36 : vector<8x8xf32> to vector<8x8xbf16>
    %cst_12 = arith.constant dense<0.000000e+00> : vector<8x8xf32>
    %38 = tpu.matmul %37, %21, %cst_12 {dimension_numbers = #tpu.dot_dimension_numbers<[1], [0], [0], [1], [0, 0, 1, 1], [], []>} : vector<8x8xbf16>, vector<8x8xbf16>, vector<8x8xf32> -> vector<8x8xf32>
    %39 = vector.extract_strided_slice %10 {offsets = [0, 8], sizes = [8, 8], strides = [1, 1]} : vector<16x32xbf16> to vector<8x8xbf16>
    %40 = vector.extract_strided_slice %12 {offsets = [0, 8], sizes = [8, 8], strides = [1, 1]} : vector<16x32xbf16> to vector<8x8xbf16>
    %41 = vector.extract_strided_slice %14 {offsets = [0, 8], sizes = [8, 8], strides = [1, 1]} : vector<16x32xbf16> to vector<8x8xbf16>
    %cst_13 = arith.constant dense<0.000000e+00> : vector<8x8xf32>
    %42 = tpu.matmul %39, %40, %cst_13 {dimension_numbers = #tpu.dot_dimension_numbers<[1], [1], [0], [0], [0, 0, 1, 0], [], []>} : vector<8x8xbf16>, vector<8x8xbf16>, vector<8x8xf32> -> vector<8x8xf32>
    %cst_14 = arith.constant -1.000000e+30 : f32
    %43 = vector.broadcast %cst_14 : f32 to vector<8x8xf32>
    %44 = arith.select %17, %42, %43 : vector<8x8xi1>, vector<8x8xf32>
    %45 = vector.broadcast %18 : vector<1x8xf32> to vector<8x8xf32>
    %46 = arith.addf %44, %45 : vector<8x8xf32>
    %cst_15 = arith.constant dense<0xFF800000> : vector<8xf32>
    %47 = vector.multi_reduction <maximumf>, %46, %cst_15 [1] : vector<8x8xf32> to vector<8xf32>
    %48 = vector.shape_cast %47 : vector<8xf32> to vector<8x1xf32>
    %49 = vector.broadcast %48 : vector<8x1xf32> to vector<8x8xf32>
    %50 = arith.subf %46, %49 : vector<8x8xf32>
    %51 = math.exp %50 : vector<8x8xf32>
    %cst_16 = arith.constant dense<0.000000e+00> : vector<8xf32>
    %52 = vector.multi_reduction <add>, %51, %cst_16 [1] : vector<8x8xf32> to vector<8xf32>
    %53 = vector.shape_cast %52 : vector<8xf32> to vector<8x1xf32>
    %54 = tpu.reciprocal %53 {approx = true} : vector<8x1xf32> -> vector<8x1xf32>
    %55 = vector.broadcast %54 : vector<8x1xf32> to vector<8x8xf32>
    %56 = arith.mulf %51, %55 : vector<8x8xf32>
    %57 = arith.truncf %56 : vector<8x8xf32> to vector<8x8xbf16>
    %cst_17 = arith.constant dense<0.000000e+00> : vector<8x8xf32>
    %58 = tpu.matmul %57, %41, %cst_17 {dimension_numbers = #tpu.dot_dimension_numbers<[1], [0], [0], [1], [0, 0, 1, 1], [], []>} : vector<8x8xbf16>, vector<8x8xbf16>, vector<8x8xf32> -> vector<8x8xf32>
    %59 = vector.extract_strided_slice %10 {offsets = [0, 16], sizes = [8, 8], strides = [1, 1]} : vector<16x32xbf16> to vector<8x8xbf16>
    %60 = vector.extract_strided_slice %12 {offsets = [0, 16], sizes = [8, 8], strides = [1, 1]} : vector<16x32xbf16> to vector<8x8xbf16>
    %61 = vector.extract_strided_slice %14 {offsets = [0, 16], sizes = [8, 8], strides = [1, 1]} : vector<16x32xbf16> to vector<8x8xbf16>
    %cst_18 = arith.constant dense<0.000000e+00> : vector<8x8xf32>
    %62 = tpu.matmul %59, %60, %cst_18 {dimension_numbers = #tpu.dot_dimension_numbers<[1], [1], [0], [0], [0, 0, 1, 0], [], []>} : vector<8x8xbf16>, vector<8x8xbf16>, vector<8x8xf32> -> vector<8x8xf32>
    %cst_19 = arith.constant -1.000000e+30 : f32
    %63 = vector.broadcast %cst_19 : f32 to vector<8x8xf32>
    %64 = arith.select %17, %62, %63 : vector<8x8xi1>, vector<8x8xf32>
    %65 = vector.broadcast %18 : vector<1x8xf32> to vector<8x8xf32>
    %66 = arith.addf %64, %65 : vector<8x8xf32>
    %cst_20 = arith.constant dense<0xFF800000> : vector<8xf32>
    %67 = vector.multi_reduction <maximumf>, %66, %cst_20 [1] : vector<8x8xf32> to vector<8xf32>
    %68 = vector.shape_cast %67 : vector<8xf32> to vector<8x1xf32>
    %69 = vector.broadcast %68 : vector<8x1xf32> to vector<8x8xf32>
    %70 = arith.subf %66, %69 : vector<8x8xf32>
    %71 = math.exp %70 : vector<8x8xf32>
    %cst_21 = arith.constant dense<0.000000e+00> : vector<8xf32>
    %72 = vector.multi_reduction <add>, %71, %cst_21 [1] : vector<8x8xf32> to vector<8xf32>
    %73 = vector.shape_cast %72 : vector<8xf32> to vector<8x1xf32>
    %74 = tpu.reciprocal %73 {approx = true} : vector<8x1xf32> -> vector<8x1xf32>
    %75 = vector.broadcast %74 : vector<8x1xf32> to vector<8x8xf32>
    %76 = arith.mulf %71, %75 : vector<8x8xf32>
    %77 = arith.truncf %76 : vector<8x8xf32> to vector<8x8xbf16>
    %cst_22 = arith.constant dense<0.000000e+00> : vector<8x8xf32>
    %78 = tpu.matmul %77, %61, %cst_22 {dimension_numbers = #tpu.dot_dimension_numbers<[1], [0], [0], [1], [0, 0, 1, 1], [], []>} : vector<8x8xbf16>, vector<8x8xbf16>, vector<8x8xf32> -> vector<8x8xf32>
    %79 = vector.extract_strided_slice %10 {offsets = [0, 24], sizes = [8, 8], strides = [1, 1]} : vector<16x32xbf16> to vector<8x8xbf16>
    %80 = vector.extract_strided_slice %12 {offsets = [0, 24], sizes = [8, 8], strides = [1, 1]} : vector<16x32xbf16> to vector<8x8xbf16>
    %81 = vector.extract_strided_slice %14 {offsets = [0, 24], sizes = [8, 8], strides = [1, 1]} : vector<16x32xbf16> to vector<8x8xbf16>
    %cst_23 = arith.constant dense<0.000000e+00> : vector<8x8xf32>
    %82 = tpu.matmul %79, %80, %cst_23 {dimension_numbers = #tpu.dot_dimension_numbers<[1], [1], [0], [0], [0, 0, 1, 0], [], []>} : vector<8x8xbf16>, vector<8x8xbf16>, vector<8x8xf32> -> vector<8x8xf32>
    %cst_24 = arith.constant -1.000000e+30 : f32
    %83 = vector.broadcast %cst_24 : f32 to vector<8x8xf32>
    %84 = arith.select %17, %82, %83 : vector<8x8xi1>, vector<8x8xf32>
    %85 = vector.broadcast %18 : vector<1x8xf32> to vector<8x8xf32>
    %86 = arith.addf %84, %85 : vector<8x8xf32>
    %cst_25 = arith.constant dense<0xFF800000> : vector<8xf32>
    %87 = vector.multi_reduction <maximumf>, %86, %cst_25 [1] : vector<8x8xf32> to vector<8xf32>
    %88 = vector.shape_cast %87 : vector<8xf32> to vector<8x1xf32>
    %89 = vector.broadcast %88 : vector<8x1xf32> to vector<8x8xf32>
    %90 = arith.subf %86, %89 : vector<8x8xf32>
    %91 = math.exp %90 : vector<8x8xf32>
    %cst_26 = arith.constant dense<0.000000e+00> : vector<8xf32>
    %92 = vector.multi_reduction <add>, %91, %cst_26 [1] : vector<8x8xf32> to vector<8xf32>
    %93 = vector.shape_cast %92 : vector<8xf32> to vector<8x1xf32>
    %94 = tpu.reciprocal %93 {approx = true} : vector<8x1xf32> -> vector<8x1xf32>
    %95 = vector.broadcast %94 : vector<8x1xf32> to vector<8x8xf32>
    %96 = arith.mulf %91, %95 : vector<8x8xf32>
    %97 = arith.truncf %96 : vector<8x8xf32> to vector<8x8xbf16>
    %cst_27 = arith.constant dense<0.000000e+00> : vector<8x8xf32>
    %98 = tpu.matmul %97, %81, %cst_27 {dimension_numbers = #tpu.dot_dimension_numbers<[1], [0], [0], [1], [0, 0, 1, 1], [], []>} : vector<8x8xbf16>, vector<8x8xbf16>, vector<8x8xf32> -> vector<8x8xf32>
    %99 = tpu.concatenate %38, %58, %78, %98 in 1 : vector<8x8xf32>, vector<8x8xf32>, vector<8x8xf32>, vector<8x8xf32> -> vector<8x32xf32>
    %100 = vector.extract_strided_slice %3 {offsets = [1, 0], sizes = [1, 8], strides = [1, 1]} : vector<2x8xf32> to vector<1x8xf32>
    %101 = vector.extract_strided_slice %10 {offsets = [8, 0], sizes = [8, 8], strides = [1, 1]} : vector<16x32xbf16> to vector<8x8xbf16>
    %102 = vector.extract_strided_slice %12 {offsets = [8, 0], sizes = [8, 8], strides = [1, 1]} : vector<16x32xbf16> to vector<8x8xbf16>
    %103 = vector.extract_strided_slice %14 {offsets = [8, 0], sizes = [8, 8], strides = [1, 1]} : vector<16x32xbf16> to vector<8x8xbf16>
    %cst_28 = arith.constant dense<0.000000e+00> : vector<8x8xf32>
    %104 = tpu.matmul %101, %102, %cst_28 {dimension_numbers = #tpu.dot_dimension_numbers<[1], [1], [0], [0], [0, 0, 1, 0], [], []>} : vector<8x8xbf16>, vector<8x8xbf16>, vector<8x8xf32> -> vector<8x8xf32>
    %cst_29 = arith.constant -1.000000e+30 : f32
    %105 = vector.broadcast %cst_29 : f32 to vector<8x8xf32>
    %106 = arith.select %17, %104, %105 : vector<8x8xi1>, vector<8x8xf32>
    %107 = vector.broadcast %100 : vector<1x8xf32> to vector<8x8xf32>
    %108 = arith.addf %106, %107 : vector<8x8xf32>
    %cst_30 = arith.constant dense<0xFF800000> : vector<8xf32>
    %109 = vector.multi_reduction <maximumf>, %108, %cst_30 [1] : vector<8x8xf32> to vector<8xf32>
    %110 = vector.shape_cast %109 : vector<8xf32> to vector<8x1xf32>
    %111 = vector.broadcast %110 : vector<8x1xf32> to vector<8x8xf32>
    %112 = arith.subf %108, %111 : vector<8x8xf32>
    %113 = math.exp %112 : vector<8x8xf32>
    %cst_31 = arith.constant dense<0.000000e+00> : vector<8xf32>
    %114 = vector.multi_reduction <add>, %113, %cst_31 [1] : vector<8x8xf32> to vector<8xf32>
    %115 = vector.shape_cast %114 : vector<8xf32> to vector<8x1xf32>
    %116 = tpu.reciprocal %115 {approx = true} : vector<8x1xf32> -> vector<8x1xf32>
    %117 = vector.broadcast %116 : vector<8x1xf32> to vector<8x8xf32>
    %118 = arith.mulf %113, %117 : vector<8x8xf32>
    %119 = arith.truncf %118 : vector<8x8xf32> to vector<8x8xbf16>
    %cst_32 = arith.constant dense<0.000000e+00> : vector<8x8xf32>
    %120 = tpu.matmul %119, %103, %cst_32 {dimension_numbers = #tpu.dot_dimension_numbers<[1], [0], [0], [1], [0, 0, 1, 1], [], []>} : vector<8x8xbf16>, vector<8x8xbf16>, vector<8x8xf32> -> vector<8x8xf32>
    %121 = vector.extract_strided_slice %10 {offsets = [8, 8], sizes = [8, 8], strides = [1, 1]} : vector<16x32xbf16> to vector<8x8xbf16>
    %122 = vector.extract_strided_slice %12 {offsets = [8, 8], sizes = [8, 8], strides = [1, 1]} : vector<16x32xbf16> to vector<8x8xbf16>
    %123 = vector.extract_strided_slice %14 {offsets = [8, 8], sizes = [8, 8], strides = [1, 1]} : vector<16x32xbf16> to vector<8x8xbf16>
    %cst_33 = arith.constant dense<0.000000e+00> : vector<8x8xf32>
    %124 = tpu.matmul %121, %122, %cst_33 {dimension_numbers = #tpu.dot_dimension_numbers<[1], [1], [0], [0], [0, 0, 1, 0], [], []>} : vector<8x8xbf16>, vector<8x8xbf16>, vector<8x8xf32> -> vector<8x8xf32>
    %cst_34 = arith.constant -1.000000e+30 : f32
    %125 = vector.broadcast %cst_34 : f32 to vector<8x8xf32>
    %126 = arith.select %17, %124, %125 : vector<8x8xi1>, vector<8x8xf32>
    %127 = vector.broadcast %100 : vector<1x8xf32> to vector<8x8xf32>
    %128 = arith.addf %126, %127 : vector<8x8xf32>
    %cst_35 = arith.constant dense<0xFF800000> : vector<8xf32>
    %129 = vector.multi_reduction <maximumf>, %128, %cst_35 [1] : vector<8x8xf32> to vector<8xf32>
    %130 = vector.shape_cast %129 : vector<8xf32> to vector<8x1xf32>
    %131 = vector.broadcast %130 : vector<8x1xf32> to vector<8x8xf32>
    %132 = arith.subf %128, %131 : vector<8x8xf32>
    %133 = math.exp %132 : vector<8x8xf32>
    %cst_36 = arith.constant dense<0.000000e+00> : vector<8xf32>
    %134 = vector.multi_reduction <add>, %133, %cst_36 [1] : vector<8x8xf32> to vector<8xf32>
    %135 = vector.shape_cast %134 : vector<8xf32> to vector<8x1xf32>
    %136 = tpu.reciprocal %135 {approx = true} : vector<8x1xf32> -> vector<8x1xf32>
    %137 = vector.broadcast %136 : vector<8x1xf32> to vector<8x8xf32>
    %138 = arith.mulf %133, %137 : vector<8x8xf32>
    %139 = arith.truncf %138 : vector<8x8xf32> to vector<8x8xbf16>
    %cst_37 = arith.constant dense<0.000000e+00> : vector<8x8xf32>
    %140 = tpu.matmul %139, %123, %cst_37 {dimension_numbers = #tpu.dot_dimension_numbers<[1], [0], [0], [1], [0, 0, 1, 1], [], []>} : vector<8x8xbf16>, vector<8x8xbf16>, vector<8x8xf32> -> vector<8x8xf32>
    %141 = vector.extract_strided_slice %10 {offsets = [8, 16], sizes = [8, 8], strides = [1, 1]} : vector<16x32xbf16> to vector<8x8xbf16>
    %142 = vector.extract_strided_slice %12 {offsets = [8, 16], sizes = [8, 8], strides = [1, 1]} : vector<16x32xbf16> to vector<8x8xbf16>
    %143 = vector.extract_strided_slice %14 {offsets = [8, 16], sizes = [8, 8], strides = [1, 1]} : vector<16x32xbf16> to vector<8x8xbf16>
    %cst_38 = arith.constant dense<0.000000e+00> : vector<8x8xf32>
    %144 = tpu.matmul %141, %142, %cst_38 {dimension_numbers = #tpu.dot_dimension_numbers<[1], [1], [0], [0], [0, 0, 1, 0], [], []>} : vector<8x8xbf16>, vector<8x8xbf16>, vector<8x8xf32> -> vector<8x8xf32>
    %cst_39 = arith.constant -1.000000e+30 : f32
    %145 = vector.broadcast %cst_39 : f32 to vector<8x8xf32>
    %146 = arith.select %17, %144, %145 : vector<8x8xi1>, vector<8x8xf32>
    %147 = vector.broadcast %100 : vector<1x8xf32> to vector<8x8xf32>
    %148 = arith.addf %146, %147 : vector<8x8xf32>
    %cst_40 = arith.constant dense<0xFF800000> : vector<8xf32>
    %149 = vector.multi_reduction <maximumf>, %148, %cst_40 [1] : vector<8x8xf32> to vector<8xf32>
    %150 = vector.shape_cast %149 : vector<8xf32> to vector<8x1xf32>
    %151 = vector.broadcast %150 : vector<8x1xf32> to vector<8x8xf32>
    %152 = arith.subf %148, %151 : vector<8x8xf32>
    %153 = math.exp %152 : vector<8x8xf32>
    %cst_41 = arith.constant dense<0.000000e+00> : vector<8xf32>
    %154 = vector.multi_reduction <add>, %153, %cst_41 [1] : vector<8x8xf32> to vector<8xf32>
    %155 = vector.shape_cast %154 : vector<8xf32> to vector<8x1xf32>
    %156 = tpu.reciprocal %155 {approx = true} : vector<8x1xf32> -> vector<8x1xf32>
    %157 = vector.broadcast %156 : vector<8x1xf32> to vector<8x8xf32>
    %158 = arith.mulf %153, %157 : vector<8x8xf32>
    %159 = arith.truncf %158 : vector<8x8xf32> to vector<8x8xbf16>
    %cst_42 = arith.constant dense<0.000000e+00> : vector<8x8xf32>
    %160 = tpu.matmul %159, %143, %cst_42 {dimension_numbers = #tpu.dot_dimension_numbers<[1], [0], [0], [1], [0, 0, 1, 1], [], []>} : vector<8x8xbf16>, vector<8x8xbf16>, vector<8x8xf32> -> vector<8x8xf32>
    %161 = vector.extract_strided_slice %10 {offsets = [8, 24], sizes = [8, 8], strides = [1, 1]} : vector<16x32xbf16> to vector<8x8xbf16>
    %162 = vector.extract_strided_slice %12 {offsets = [8, 24], sizes = [8, 8], strides = [1, 1]} : vector<16x32xbf16> to vector<8x8xbf16>
    %163 = vector.extract_strided_slice %14 {offsets = [8, 24], sizes = [8, 8], strides = [1, 1]} : vector<16x32xbf16> to vector<8x8xbf16>
    %cst_43 = arith.constant dense<0.000000e+00> : vector<8x8xf32>
    %164 = tpu.matmul %161, %162, %cst_43 {dimension_numbers = #tpu.dot_dimension_numbers<[1], [1], [0], [0], [0, 0, 1, 0], [], []>} : vector<8x8xbf16>, vector<8x8xbf16>, vector<8x8xf32> -> vector<8x8xf32>
    %cst_44 = arith.constant -1.000000e+30 : f32
    %165 = vector.broadcast %cst_44 : f32 to vector<8x8xf32>
    %166 = arith.select %17, %164, %165 : vector<8x8xi1>, vector<8x8xf32>
    %167 = vector.broadcast %100 : vector<1x8xf32> to vector<8x8xf32>
    %168 = arith.addf %166, %167 : vector<8x8xf32>
    %cst_45 = arith.constant dense<0xFF800000> : vector<8xf32>
    %169 = vector.multi_reduction <maximumf>, %168, %cst_45 [1] : vector<8x8xf32> to vector<8xf32>
    %170 = vector.shape_cast %169 : vector<8xf32> to vector<8x1xf32>
    %171 = vector.broadcast %170 : vector<8x1xf32> to vector<8x8xf32>
    %172 = arith.subf %168, %171 : vector<8x8xf32>
    %173 = math.exp %172 : vector<8x8xf32>
    %cst_46 = arith.constant dense<0.000000e+00> : vector<8xf32>
    %174 = vector.multi_reduction <add>, %173, %cst_46 [1] : vector<8x8xf32> to vector<8xf32>
    %175 = vector.shape_cast %174 : vector<8xf32> to vector<8x1xf32>
    %176 = tpu.reciprocal %175 {approx = true} : vector<8x1xf32> -> vector<8x1xf32>
    %177 = vector.broadcast %176 : vector<8x1xf32> to vector<8x8xf32>
    %178 = arith.mulf %173, %177 : vector<8x8xf32>
    %179 = arith.truncf %178 : vector<8x8xf32> to vector<8x8xbf16>
    %cst_47 = arith.constant dense<0.000000e+00> : vector<8x8xf32>
    %180 = tpu.matmul %179, %163, %cst_47 {dimension_numbers = #tpu.dot_dimension_numbers<[1], [0], [0], [1], [0, 0, 1, 1], [], []>} : vector<8x8xbf16>, vector<8x8xbf16>, vector<8x8xf32> -> vector<8x8xf32>
    %181 = tpu.concatenate %120, %140, %160, %180 in 1 : vector<8x8xf32>, vector<8x8xf32>, vector<8x8xf32>, vector<8x8xf32> -> vector<8x32xf32>
    %182 = tpu.concatenate %99, %181 in 0 : vector<8x32xf32>, vector<8x32xf32> -> vector<16x32xf32>
    %c0_48 = arith.constant 0 : index
    %c0_49 = arith.constant 0 : index
    %183 = vector.load %arg4[%c0_48, %c0_49] : memref<16x32xf32, #tpu.memory_space<vmem>>, vector<16x32xf32>
    tpu.vector_store %arg4[%c0_48, %c0_49], %182 {strides = array<i32>} : memref<16x32xf32, #tpu.memory_space<vmem>>, vector<16x32xf32>,
    return
  }
}

</mosaic_0001>

<llo_original>
// kernel: tpu_custom_call.1
$region0: #{tpu_custom_call.1}
  #allocation0 [shape = 'u32[]', space=smem, size = 0x4, offset = 0x4, fixed_abs, tag = 'smem constant byte address 0x4 - core index']
  #allocation1 [shape = 'u32[144,128]{1,0:T(1,128)}', space=vmem, size = 0x12000, scoped, tag = 'internal scratch']
  %s0 = inlined_call_operand.hbm [shape: bf16[16,32], index: 0, kind: input, shape index: {}]
  %s1 = inlined_call_operand.hbm [shape: bf16[32,96], index: 1, kind: input, shape index: {}]
  %s2 = inlined_call_operand.vmem [shape: f32[1,96], index: 2, kind: input, shape index: {}]
  %s3 = inlined_call_operand.vmem [shape: f32[2,8], index: 3, kind: input, shape index: {}]
  %s4 = inlined_call_operand.hbm [shape: f32[16,32], index: 4, kind: output, shape index: {}]
  %s5 = sld [smem:[#allocation0]]
  $region34: #{tpu_custom_call.1} parent=0
    _
  %s7 = ssub.s32 1, %s5
  %s8 = scalar_select 0, %s7, %s5
  $region1: #{tpu_custom_call.1} parent=0
    #allocation2 [shape = 'u8[4096]{0}', space=vmem, size = 0x1000, scoped, tag = 'input window, operand 0, single buffered']
    #allocation3 [shape = 's32[1]{0}', space=sflag, size = 0x4, scoped, tag = 'scoped memory for tpu_custom_call.1']
    #allocation4 [shape = 's32[1]{0}', space=sflag, size = 0x4, scoped, tag = 'scoped memory for tpu_custom_call.1']
    #allocation5 [shape = 'u8[8192]{0}', space=vmem, size = 0x2000, scoped, tag = 'input window, operand 1, single buffered']
    #allocation6 [shape = 's32[1]{0}', space=sflag, size = 0x4, scoped, tag = 'scoped memory for tpu_custom_call.1']
    #allocation7 [shape = 'u8[8192]{0}', space=vmem, size = 0x2000, scoped, tag = 'output window, operand 0, single buffered']
    %9 = vsyncpa [#allocation3], 0
    %10 = vsyncpa [#allocation6], 0
    %11 = vsyncpa [#allocation4], 0
    // Predicated region
    $region2: #{tpu_custom_call.1} parent=1 // pred_check
      _
    $region3: #{tpu_custom_call.1} parent=1 // pred_check_branch
      %13 = sbr.rel (0) target = $region5
    $region4: #{tpu_custom_call.1} parent=1 // pred_region
      %s15 = ssub.s32 128, 128
      %16 = vsyncadd [#allocation3], %s15
      %s17 = sshll.u32 [#allocation2], 4
      %s18 = int_to_ptr.vmem [resolvable:$true] %s17
      %23 = dma.hbm_to_vmem [thread:$0]  %s0, 128, %s18, [#allocation3], 64, 64, 4
    $region5: #{tpu_custom_call.1} parent=1 // pred_fallthru
      _
    // Predicated region
    $region6: #{tpu_custom_call.1} parent=1 // pred_check
      _
    $region7: #{tpu_custom_call.1} parent=1 // pred_check_branch
      %25 = sbr.rel (0) target = $region9
    $region8: #{tpu_custom_call.1} parent=1 // pred_region
      %s27 = ssub.s32 256, 256
      %28 = vsyncadd [#allocation6], %s27
      %s29 = sshll.u32 [#allocation5], 4
      %s30 = int_to_ptr.vmem [resolvable:$true] %s29
      %35 = dma.hbm_to_vmem [thread:$0]  %s1, 256, %s30, [#allocation6], 64, 64, 4
    $region9: #{tpu_custom_call.1} parent=1 // pred_fallthru
      _
    // Predicated region
    $region10: #{tpu_custom_call.1} parent=1 // pred_check
      _
    $region11: #{tpu_custom_call.1} parent=1 // pred_check_branch
      %37 = sbr.rel (0) target = $region13
    $region12: #{tpu_custom_call.1} parent=1 // pred_region
      _
    $region13: #{tpu_custom_call.1} parent=1 // pred_fallthru
      _
    // Predicated region
    $region14: #{tpu_custom_call.1} parent=1 // pred_check
      _
    $region15: #{tpu_custom_call.1} parent=1 // pred_check_branch
      %39 = sbr.rel (0) target = $region17
    $region16: #{tpu_custom_call.1} parent=1 // pred_region
      _
    $region17: #{tpu_custom_call.1} parent=1 // pred_fallthru
      _
    // Predicated region
    $region18: #{tpu_custom_call.1} parent=1 // pred_check
      _
    $region19: #{tpu_custom_call.1} parent=1 // pred_check_branch
      %41 = sbr.rel (0) target = $region21
    $region20: #{tpu_custom_call.1} parent=1 // pred_region
      %42 = dma.done [#allocation3], 128
    $region21: #{tpu_custom_call.1} parent=1 // pred_fallthru
      _
    // Predicated region
    $region22: #{tpu_custom_call.1} parent=1 // pred_check
      _
    $region23: #{tpu_custom_call.1} parent=1 // pred_check_branch
      %44 = sbr.rel (0) target = $region25
    $region24: #{tpu_custom_call.1} parent=1 // pred_region
      %45 = dma.done [#allocation6], 256
    $region25: #{tpu_custom_call.1} parent=1 // pred_fallthru
      _
    %v47 = vld [vmem:[#allocation2] sm:$0xf]
    %v48 = vld [vmem:[#allocation2 + $0x4] sm:$0xf]
    %v49 = vld [vmem:[#allocation5] sm:$0xf]
    %v50 = vld [vmem:[#allocation5 + $0x4] sm:$0xf]
    %v51 = vld [vmem:[#allocation5 + $0x8] sm:$0xf]
    %v52 = vld [vmem:[#allocation5 + $0xc] sm:$0xf]
    %v53 = vld [vmem:[%s2] sm:$0x1]
    %v54 = vld [vmem:[%s3] sm:$0x3]
    %v56 = vlaneseq
    %v57 = vshrl.u32 %v56, 7
    %v58 = vsub.s32 0, %v57
    %v59 = vrot.slane %v53, %v58
    %v63 = vunpack.c.l.b16 %v47
    %v64 = vunpack.c.l.b16 %v48
    %v65 = vpack.c.b16 %v64, %v63
    %v70 = vunpack.c.l.b16 %v49
    %v71 = vunpack.c.l.b16 %v50
    %v72 = vunpack.c.l.b16 %v51
    %v73 = vunpack.c.l.b16 %v52
    %v74 = vpack.c.b16 %v71, %v70
    %v75 = vpack.c.b16 %v73, %v72
    %vm78 = vcmask 261120
    %v80 = vsel %vm78, %v65, 0
    %82 = vmatprep.subr.bf16.mxu0 0
    %83 = vmatpush1.bf16.msra.mxu0 %v74
    %84 = vmatprep.subr.bf16.mxu0 0
    %85 = vmatpush1.bf16.msra.mxu0 %v75
    %86 = vmatprep.subr.bf16.mxu0 0
    %87 = vmatpush1.bf16.msra.mxu0 0
    %88 = vmatprep.subr.bf16.mxu0 0
    %89 = vmatpush1.bf16.msra.mxu0 0
    %90 = vmatprep.subr.bf16.mxu0 0
    %91 = vmatpush1.bf16.msra.mxu0 0
    %92 = vmatprep.subr.bf16.mxu0 0
    %93 = vmatpush1.bf16.msra.mxu0 0
    %94 = vmatprep.subr.bf16.mxu0 0
    %95 = vmatpush1.bf16.msra.mxu0 0
    %96 = vmatprep.subr.bf16.mxu0 0
    %97 = vmatpush1.bf16.msra.mxu0 0
    %98 = vmatprep.subr.bf16.mxu0 0
    %99 = vmatpush1.bf16.msra.mxu0 0
    %100 = vmatprep.subr.bf16.mxu0 0
    %101 = vmatpush1.bf16.msra.mxu0 0
    %102 = vmatprep.subr.bf16.mxu0 0
    %103 = vmatpush1.bf16.msra.mxu0 0
    %104 = vmatprep.subr.bf16.mxu0 0
    %105 = vmatpush1.bf16.msra.mxu0 0
    %106 = vmatprep.subr.bf16.mxu0 0
    %107 = vmatpush1.bf16.msra.mxu0 0
    %108 = vmatprep.subr.bf16.mxu0 0
    %109 = vmatpush1.bf16.msra.mxu0 0
    %110 = vmatprep.subr.bf16.mxu0 0
    %111 = vmatpush1.bf16.msra.mxu0 0
    %112 = vmatprep.subr.bf16.mxu0 0
    %113 = vmatpush1.bf16.msra.mxu0 0
    %114 = vmatprep.mubr.bf16.mxu0 0
    %115 = vmatmul.mubr.bf16.gmra.mrb[0].mxu0 %v80
    %v116 = vpop.f32.mrb[0].mxu0
    %v117 = vadd.f32 %v59, %v116
    %v118 = vpop.f32.mrb[0].mxu0
    %v119 = vpop.f32.mrb[0].mxu0
    %v120 = vadd.f32 %v59, %v119
    %v121 = vpop.f32.mrb[0].mxu0
    %122 = vdwg.mxu0
    %v123 = vmul.f32 %v117, 0.35355338
    %v124 = vmul.f32 %v120, 0.35355338
    %v125 = vpack.c.bf16 %v124, %v123
    %v126 = vpack.c.bf16 %v120, %v117
    %v127 = vlaneseq
    %v128 = vshrl.u32 %v127, 7
    %v129 = vlaneseq
    %v130 = vand.u32 %v129, 127
    %vm131 = vcmp.le.s32.totalorder %v130, %v128
    %133 = vrot.lane.b32.xlu0 %v126, 96
    %v134 = vpop.permute.xlu0 %133
    %vm135 = vcmask 64512
    %v137 = vsel %vm135, %v125, 0
    %v140 = vsel %vm135, %v134, 0
    %142 = vmatprep.subr.bf16.mxu0 0
    %143 = vmatpush1.bf16.xpose.msra.mxu0 %v140
    %144 = vmatprep.subr.bf16.mxu0 0
    %145 = vmatpush1.bf16.xpose.msra.mxu0 0
    %146 = vmatprep.subr.bf16.mxu0 0
    %147 = vmatpush1.bf16.xpose.msra.mxu0 0
    %148 = vmatprep.subr.bf16.mxu0 0
    %149 = vmatpush1.bf16.xpose.msra.mxu0 0
    %150 = vmatprep.subr.bf16.mxu0 0
    %151 = vmatpush1.bf16.xpose.msra.mxu0 0
    %152 = vmatprep.subr.bf16.mxu0 0
    %153 = vmatpush1.bf16.xpose.msra.mxu0 0
    %154 = vmatprep.subr.bf16.mxu0 0
    %155 = vmatpush1.bf16.xpose.msra.mxu0 0
    %156 = vmatprep.subr.bf16.mxu0 0
    %157 = vmatpush1.bf16.xpose.msra.mxu0 0
    %158 = vmatprep.subr.bf16.mxu0 0
    %159 = vmatpush1.bf16.xpose.msra.mxu0 0
    %160 = vmatprep.subr.bf16.mxu0 0
    %161 = vmatpush1.bf16.xpose.msra.mxu0 0
    %162 = vmatprep.subr.bf16.mxu0 0
    %163 = vmatpush1.bf16.xpose.msra.mxu0 0
    %164 = vmatprep.subr.bf16.mxu0 0
    %165 = vmatpush1.bf16.xpose.msra.mxu0 0
    %166 = vmatprep.subr.bf16.mxu0 0
    %167 = vmatpush1.bf16.xpose.msra.mxu0 0
    %168 = vmatprep.subr.bf16.mxu0 0
    %169 = vmatpush1.bf16.xpose.msra.mxu0 0
    %170 = vmatprep.subr.bf16.mxu0 0
    %171 = vmatpush1.bf16.xpose.msra.mxu0 0
    %172 = vmatprep.subr.bf16.mxu0 0
    %173 = vmatpush1.bf16.xpose.msra.mxu0 0
    %174 = vmatprep.mubr.bf16.mxu0 0
    %175 = vmatmul.mubr.bf16.gmra.mrb[0].mxu0 %v137
    %v176 = vpop.f32.mrb[0].mxu0
    %v177 = vadd.f32 0.0, %v176
    %v178 = vpop.f32.mrb[0].mxu0
    %v179 = vpop.f32.mrb[0].mxu0
    %v180 = vpop.f32.mrb[0].mxu0
    %181 = vdwg.mxu0
    %v182 = vsel %vm131, %v177, -1e+30
    %v183 = vlaneseq
    %v184 = vshrl.u32 %v183, 7
    %v185 = vsub.s32 0, %v184
    %v186 = vrot.slane %v54, %v185
    %v187 = vadd.f32 %v182, %v186
    %v188 = vsel %vm135, %v187, -inf
    %189 = vmax.xlane.f32.xlu0 %v188
    %v190 = vpop.xlane.xlu0 %189
    %v191 = vsub.f32 %v187, %v190
    %v192 = vmul.f32 %v191, 1.442695
    %v193 = vpow.pop %v192
    %v194 = vsel %vm135, %v193, 0.0
    %195 = vadd.xlane.f32.xlu0 %v194
    %v196 = vpop.xlane.xlu0 %195
    %v197 = vrcp.pop %v196
    %v198 = vmul.f32 %v193, %v197
    %v199 = vpack.c.bf16 %v198, %v198
    %200 = vrot.lane.b32.xlu0 %v126, 64
    %v201 = vpop.permute.xlu0 %200
    %v203 = vsel %vm135, %v199, 0
    %vm205 = vcmask 1043456
    %v207 = vsel %vm205, %v201, 0
    %209 = vmatprep.subr.bf16.mxu0 0
    %210 = vmatpush1.bf16.msra.mxu0 %v207
    %211 = vmatprep.subr.bf16.mxu0 0
    %212 = vmatpush1.bf16.msra.mxu0 0
    %213 = vmatprep.subr.bf16.mxu0 0
    %214 = vmatpush1.bf16.msra.mxu0 0
    %215 = vmatprep.subr.bf16.mxu0 0
    %216 = vmatpush1.bf16.msra.mxu0 0
    %217 = vmatprep.subr.bf16.mxu0 0
    %218 = vmatpush1.bf16.msra.mxu0 0
    %219 = vmatprep.subr.bf16.mxu0 0
    %220 = vmatpush1.bf16.msra.mxu0 0
    %221 = vmatprep.subr.bf16.mxu0 0
    %222 = vmatpush1.bf16.msra.mxu0 0
    %223 = vmatprep.subr.bf16.mxu0 0
    %224 = vmatpush1.bf16.msra.mxu0 0
    %225 = vmatprep.subr.bf16.mxu0 0
    %226 = vmatpush1.bf16.msra.mxu0 0
    %227 = vmatprep.subr.bf16.mxu0 0
    %228 = vmatpush1.bf16.msra.mxu0 0
    %229 = vmatprep.subr.bf16.mxu0 0
    %230 = vmatpush1.bf16.msra.mxu0 0
    %231 = vmatprep.subr.bf16.mxu0 0
    %232 = vmatpush1.bf16.msra.mxu0 0
    %233 = vmatprep.subr.bf16.mxu0 0
    %234 = vmatpush1.bf16.msra.mxu0 0
    %235 = vmatprep.subr.bf16.mxu0 0
    %236 = vmatpush1.bf16.msra.mxu0 0
    %237 = vmatprep.subr.bf16.mxu0 0
    %238 = vmatpush1.bf16.msra.mxu0 0
    %239 = vmatprep.subr.bf16.mxu0 0
    %240 = vmatpush1.bf16.msra.mxu0 0
    %241 = vmatprep.mubr.bf16.mxu0 0
    %242 = vmatmul.mubr.bf16.gmra.mrb[0].mxu0 %v203
    %v243 = vpop.f32.mrb[0].mxu0
    %v244 = vadd.f32 0.0, %v243
    %v245 = vpop.f32.mrb[0].mxu0
    %v246 = vpop.f32.mrb[0].mxu0
    %v247 = vpop.f32.mrb[0].mxu0
    %248 = vdwg.mxu0
    %250 = vrot.lane.b32.xlu0 %v125, 120
    %v251 = vpop.permute.xlu0 %250
    %252 = vrot.lane.b32.xlu0 %v126, 88
    %v253 = vpop.permute.xlu0 %252
    %v255 = vsel %vm135, %v251, 0
    %v258 = vsel %vm135, %v253, 0
    %260 = vmatprep.subr.bf16.mxu0 0
    %261 = vmatpush1.bf16.xpose.msra.mxu0 %v258
    %262 = vmatprep.subr.bf16.mxu0 0
    %263 = vmatpush1.bf16.xpose.msra.mxu0 0
    %264 = vmatprep.subr.bf16.mxu0 0
    %265 = vmatpush1.bf16.xpose.msra.mxu0 0
    %266 = vmatprep.subr.bf16.mxu0 0
    %267 = vmatpush1.bf16.xpose.msra.mxu0 0
    %268 = vmatprep.subr.bf16.mxu0 0
    %269 = vmatpush1.bf16.xpose.msra.mxu0 0
    %270 = vmatprep.subr.bf16.mxu0 0
    %271 = vmatpush1.bf16.xpose.msra.mxu0 0
    %272 = vmatprep.subr.bf16.mxu0 0
    %273 = vmatpush1.bf16.xpose.msra.mxu0 0
    %274 = vmatprep.subr.bf16.mxu0 0
    %275 = vmatpush1.bf16.xpose.msra.mxu0 0
    %276 = vmatprep.subr.bf16.mxu0 0
    %277 = vmatpush1.bf16.xpose.msra.mxu0 0
    %278 = vmatprep.subr.bf16.mxu0 0
    %279 = vmatpush1.bf16.xpose.msra.mxu0 0
    %280 = vmatprep.subr.bf16.mxu0 0
    %281 = vmatpush1.bf16.xpose.msra.mxu0 0
    %282 = vmatprep.subr.bf16.mxu0 0
    %283 = vmatpush1.bf16.xpose.msra.mxu0 0
    %284 = vmatprep.subr.bf16.mxu0 0
    %285 = vmatpush1.bf16.xpose.msra.mxu0 0
    %286 = vmatprep.subr.bf16.mxu0 0
    %287 = vmatpush1.bf16.xpose.msra.mxu0 0
    %288 = vmatprep.subr.bf16.mxu0 0
    %289 = vmatpush1.bf16.xpose.msra.mxu0 0
    %290 = vmatprep.subr.bf16.mxu0 0
    %291 = vmatpush1.bf16.xpose.msra.mxu0 0
    %292 = vmatprep.mubr.bf16.mxu0 0
    %293 = vmatmul.mubr.bf16.gmra.mrb[0].mxu0 %v255
    %v294 = vpop.f32.mrb[0].mxu0
    %v295 = vadd.f32 0.0, %v294
    %v296 = vpop.f32.mrb[0].mxu0
    %v297 = vpop.f32.mrb[0].mxu0
    %v298 = vpop.f32.mrb[0].mxu0
    %299 = vdwg.mxu0
    %v300 = vsel %vm131, %v295, -1e+30
    %v301 = vadd.f32 %v300, %v186
    %v302 = vsel %vm135, %v301, -inf
    %303 = vmax.xlane.f32.xlu0 %v302
    %v304 = vpop.xlane.xlu0 %303
    %v305 = vsub.f32 %v301, %v304
    %v306 = vmul.f32 %v305, 1.442695
    %v307 = vpow.pop %v306
    %v308 = vsel %vm135, %v307, 0.0
    %309 = vadd.xlane.f32.xlu0 %v308
    %v310 = vpop.xlane.xlu0 %309
    %v311 = vrcp.pop %v310
    %v312 = vmul.f32 %v307, %v311
    %v313 = vpack.c.bf16 %v312, %v312
    %314 = vrot.lane.b32.xlu0 %v126, 56
    %v315 = vpop.permute.xlu0 %314
    %v317 = vsel %vm135, %v313, 0
    %v320 = vsel %vm205, %v315, 0
    %322 = vmatprep.subr.bf16.mxu0 0
    %323 = vmatpush1.bf16.msra.mxu0 %v320
    %324 = vmatprep.subr.bf16.mxu0 0
    %325 = vmatpush1.bf16.msra.mxu0 0
    %326 = vmatprep.subr.bf16.mxu0 0
    %327 = vmatpush1.bf16.msra.mxu0 0
    %328 = vmatprep.subr.bf16.mxu0 0
    %329 = vmatpush1.bf16.msra.mxu0 0
    %330 = vmatprep.subr.bf16.mxu0 0
    %331 = vmatpush1.bf16.msra.mxu0 0
    %332 = vmatprep.subr.bf16.mxu0 0
    %333 = vmatpush1.bf16.msra.mxu0 0
    %334 = vmatprep.subr.bf16.mxu0 0
    %335 = vmatpush1.bf16.msra.mxu0 0
    %336 = vmatprep.subr.bf16.mxu0 0
    %337 = vmatpush1.bf16.msra.mxu0 0
    %338 = vmatprep.subr.bf16.mxu0 0
    %339 = vmatpush1.bf16.msra.mxu0 0
    %340 = vmatprep.subr.bf16.mxu0 0
    %341 = vmatpush1.bf16.msra.mxu0 0
    %342 = vmatprep.subr.bf16.mxu0 0
    %343 = vmatpush1.bf16.msra.mxu0 0
    %344 = vmatprep.subr.bf16.mxu0 0
    %345 = vmatpush1.bf16.msra.mxu0 0
    %346 = vmatprep.subr.bf16.mxu0 0
    %347 = vmatpush1.bf16.msra.mxu0 0
    %348 = vmatprep.subr.bf16.mxu0 0
    %349 = vmatpush1.bf16.msra.mxu0 0
    %350 = vmatprep.subr.bf16.mxu0 0
    %351 = vmatpush1.bf16.msra.mxu0 0
    %352 = vmatprep.subr.bf16.mxu0 0
    %353 = vmatpush1.bf16.msra.mxu0 0
    %354 = vmatprep.mubr.bf16.mxu0 0
    %355 = vmatmul.mubr.bf16.gmra.mrb[0].mxu0 %v317
    %v356 = vpop.f32.mrb[0].mxu0
    %v357 = vadd.f32 0.0, %v356
    %v358 = vpop.f32.mrb[0].mxu0
    %v359 = vpop.f32.mrb[0].mxu0
    %v360 = vpop.f32.mrb[0].mxu0
    %361 = vdwg.mxu0
    %362 = vrot.lane.b32.xlu0 %v125, 112
    %v363 = vpop.permute.xlu0 %362
    %364 = vrot.lane.b32.xlu0 %v126, 80
    %v365 = vpop.permute.xlu0 %364
    %v367 = vsel %vm135, %v363, 0
    %v370 = vsel %vm135, %v365, 0
    %372 = vmatprep.subr.bf16.mxu0 0
    %373 = vmatpush1.bf16.xpose.msra.mxu0 %v370
    %374 = vmatprep.subr.bf16.mxu0 0
    %375 = vmatpush1.bf16.xpose.msra.mxu0 0
    %376 = vmatprep.subr.bf16.mxu0 0
    %377 = vmatpush1.bf16.xpose.msra.mxu0 0
    %378 = vmatprep.subr.bf16.mxu0 0
    %379 = vmatpush1.bf16.xpose.msra.mxu0 0
    %380 = vmatprep.subr.bf16.mxu0 0
    %381 = vmatpush1.bf16.xpose.msra.mxu0 0
    %382 = vmatprep.subr.bf16.mxu0 0
    %383 = vmatpush1.bf16.xpose.msra.mxu0 0
    %384 = vmatprep.subr.bf16.mxu0 0
    %385 = vmatpush1.bf16.xpose.msra.mxu0 0
    %386 = vmatprep.subr.bf16.mxu0 0
    %387 = vmatpush1.bf16.xpose.msra.mxu0 0
    %388 = vmatprep.subr.bf16.mxu0 0
    %389 = vmatpush1.bf16.xpose.msra.mxu0 0
    %390 = vmatprep.subr.bf16.mxu0 0
    %391 = vmatpush1.bf16.xpose.msra.mxu0 0
    %392 = vmatprep.subr.bf16.mxu0 0
    %393 = vmatpush1.bf16.xpose.msra.mxu0 0
    %394 = vmatprep.subr.bf16.mxu0 0
    %395 = vmatpush1.bf16.xpose.msra.mxu0 0
    %396 = vmatprep.subr.bf16.mxu0 0
    %397 = vmatpush1.bf16.xpose.msra.mxu0 0
    %398 = vmatprep.subr.bf16.mxu0 0
    %399 = vmatpush1.bf16.xpose.msra.mxu0 0
    %400 = vmatprep.subr.bf16.mxu0 0
    %401 = vmatpush1.bf16.xpose.msra.mxu0 0
    %402 = vmatprep.subr.bf16.mxu0 0
    %403 = vmatpush1.bf16.xpose.msra.mxu0 0
    %404 = vmatprep.mubr.bf16.mxu0 0
    %405 = vmatmul.mubr.bf16.gmra.mrb[0].mxu0 %v367
    %v406 = vpop.f32.mrb[0].mxu0
    %v407 = vadd.f32 0.0, %v406
    %v408 = vpop.f32.mrb[0].mxu0
    %v409 = vpop.f32.mrb[0].mxu0
    %v410 = vpop.f32.mrb[0].mxu0
    %411 = vdwg.mxu0
    %v412 = vsel %vm131, %v407, -1e+30
    %v413 = vadd.f32 %v412, %v186
    %v414 = vsel %vm135, %v413, -inf
    %415 = vmax.xlane.f32.xlu0 %v414
    %v416 = vpop.xlane.xlu0 %415
    %v417 = vsub.f32 %v413, %v416
    %v418 = vmul.f32 %v417, 1.442695
    %v419 = vpow.pop %v418
    %v420 = vsel %vm135, %v419, 0.0
    %421 = vadd.xlane.f32.xlu0 %v420
    %v422 = vpop.xlane.xlu0 %421
    %v423 = vrcp.pop %v422
    %v424 = vmul.f32 %v419, %v423
    %v425 = vpack.c.bf16 %v424, %v424
    %426 = vrot.lane.b32.xlu0 %v126, 48
    %v427 = vpop.permute.xlu0 %426
    %v429 = vsel %vm135, %v425, 0
    %v432 = vsel %vm205, %v427, 0
    %434 = vmatprep.subr.bf16.mxu0 0
    %435 = vmatpush1.bf16.msra.mxu0 %v432
    %436 = vmatprep.subr.bf16.mxu0 0
    %437 = vmatpush1.bf16.msra.mxu0 0
    %438 = vmatprep.subr.bf16.mxu0 0
    %439 = vmatpush1.bf16.msra.mxu0 0
    %440 = vmatprep.subr.bf16.mxu0 0
    %441 = vmatpush1.bf16.msra.mxu0 0
    %442 = vmatprep.subr.bf16.mxu0 0
    %443 = vmatpush1.bf16.msra.mxu0 0
    %444 = vmatprep.subr.bf16.mxu0 0
    %445 = vmatpush1.bf16.msra.mxu0 0
    %446 = vmatprep.subr.bf16.mxu0 0
    %447 = vmatpush1.bf16.msra.mxu0 0
    %448 = vmatprep.subr.bf16.mxu0 0
    %449 = vmatpush1.bf16.msra.mxu0 0
    %450 = vmatprep.subr.bf16.mxu0 0
    %451 = vmatpush1.bf16.msra.mxu0 0
    %452 = vmatprep.subr.bf16.mxu0 0
    %453 = vmatpush1.bf16.msra.mxu0 0
    %454 = vmatprep.subr.bf16.mxu0 0
    %455 = vmatpush1.bf16.msra.mxu0 0
    %456 = vmatprep.subr.bf16.mxu0 0
    %457 = vmatpush1.bf16.msra.mxu0 0
    %458 = vmatprep.subr.bf16.mxu0 0
    %459 = vmatpush1.bf16.msra.mxu0 0
    %460 = vmatprep.subr.bf16.mxu0 0
    %461 = vmatpush1.bf16.msra.mxu0 0
    %462 = vmatprep.subr.bf16.mxu0 0
    %463 = vmatpush1.bf16.msra.mxu0 0
    %464 = vmatprep.subr.bf16.mxu0 0
    %465 = vmatpush1.bf16.msra.mxu0 0
    %466 = vmatprep.mubr.bf16.mxu0 0
    %467 = vmatmul.mubr.bf16.gmra.mrb[0].mxu0 %v429
    %v468 = vpop.f32.mrb[0].mxu0
    %v469 = vadd.f32 0.0, %v468
    %v470 = vpop.f32.mrb[0].mxu0
    %v471 = vpop.f32.mrb[0].mxu0
    %v472 = vpop.f32.mrb[0].mxu0
    %473 = vdwg.mxu0
    %474 = vrot.lane.b32.xlu0 %v125, 104
    %v475 = vpop.permute.xlu0 %474
    %476 = vrot.lane.b32.xlu0 %v126, 72
    %v477 = vpop.permute.xlu0 %476
    %v479 = vsel %vm135, %v475, 0
    %v482 = vsel %vm135, %v477, 0
    %484 = vmatprep.subr.bf16.mxu0 0
    %485 = vmatpush1.bf16.xpose.msra.mxu0 %v482
    %486 = vmatprep.subr.bf16.mxu0 0
    %487 = vmatpush1.bf16.xpose.msra.mxu0 0
    %488 = vmatprep.subr.bf16.mxu0 0
    %489 = vmatpush1.bf16.xpose.msra.mxu0 0
    %490 = vmatprep.subr.bf16.mxu0 0
    %491 = vmatpush1.bf16.xpose.msra.mxu0 0
    %492 = vmatprep.subr.bf16.mxu0 0
    %493 = vmatpush1.bf16.xpose.msra.mxu0 0
    %494 = vmatprep.subr.bf16.mxu0 0
    %495 = vmatpush1.bf16.xpose.msra.mxu0 0
    %496 = vmatprep.subr.bf16.mxu0 0
    %497 = vmatpush1.bf16.xpose.msra.mxu0 0
    %498 = vmatprep.subr.bf16.mxu0 0
    %499 = vmatpush1.bf16.xpose.msra.mxu0 0
    %500 = vmatprep.subr.bf16.mxu0 0
    %501 = vmatpush1.bf16.xpose.msra.mxu0 0
    %502 = vmatprep.subr.bf16.mxu0 0
    %503 = vmatpush1.bf16.xpose.msra.mxu0 0
    %504 = vmatprep.subr.bf16.mxu0 0
    %505 = vmatpush1.bf16.xpose.msra.mxu0 0
    %506 = vmatprep.subr.bf16.mxu0 0
    %507 = vmatpush1.bf16.xpose.msra.mxu0 0
    %508 = vmatprep.subr.bf16.mxu0 0
    %509 = vmatpush1.bf16.xpose.msra.mxu0 0
    %510 = vmatprep.subr.bf16.mxu0 0
    %511 = vmatpush1.bf16.xpose.msra.mxu0 0
    %512 = vmatprep.subr.bf16.mxu0 0
    %513 = vmatpush1.bf16.xpose.msra.mxu0 0
    %514 = vmatprep.subr.bf16.mxu0 0
    %515 = vmatpush1.bf16.xpose.msra.mxu0 0
    %516 = vmatprep.mubr.bf16.mxu0 0
    %517 = vmatmul.mubr.bf16.gmra.mrb[0].mxu0 %v479
    %v518 = vpop.f32.mrb[0].mxu0
    %v519 = vadd.f32 0.0, %v518
    %v520 = vpop.f32.mrb[0].mxu0
    %v521 = vpop.f32.mrb[0].mxu0
    %v522 = vpop.f32.mrb[0].mxu0
    %523 = vdwg.mxu0
    %v524 = vsel %vm131, %v519, -1e+30
    %v525 = vadd.f32 %v524, %v186
    %v526 = vsel %vm135, %v525, -inf
    %527 = vmax.xlane.f32.xlu0 %v526
    %v528 = vpop.xlane.xlu0 %527
    %v529 = vsub.f32 %v525, %v528
    %v530 = vmul.f32 %v529, 1.442695
    %v531 = vpow.pop %v530
    %v532 = vsel %vm135, %v531, 0.0
    %533 = vadd.xlane.f32.xlu0 %v532
    %v534 = vpop.xlane.xlu0 %533
    %v535 = vrcp.pop %v534
    %v536 = vmul.f32 %v531, %v535
    %v537 = vpack.c.bf16 %v536, %v536
    %538 = vrot.lane.b32.xlu0 %v126, 40
    %v539 = vpop.permute.xlu0 %538
    %v541 = vsel %vm135, %v537, 0
    %v544 = vsel %vm205, %v539, 0
    %546 = vmatprep.subr.bf16.mxu0 0
    %547 = vmatpush1.bf16.msra.mxu0 %v544
    %548 = vmatprep.subr.bf16.mxu0 0
    %549 = vmatpush1.bf16.msra.mxu0 0
    %550 = vmatprep.subr.bf16.mxu0 0
    %551 = vmatpush1.bf16.msra.mxu0 0
    %552 = vmatprep.subr.bf16.mxu0 0
    %553 = vmatpush1.bf16.msra.mxu0 0
    %554 = vmatprep.subr.bf16.mxu0 0
    %555 = vmatpush1.bf16.msra.mxu0 0
    %556 = vmatprep.subr.bf16.mxu0 0
    %557 = vmatpush1.bf16.msra.mxu0 0
    %558 = vmatprep.subr.bf16.mxu0 0
    %559 = vmatpush1.bf16.msra.mxu0 0
    %560 = vmatprep.subr.bf16.mxu0 0
    %561 = vmatpush1.bf16.msra.mxu0 0
    %562 = vmatprep.subr.bf16.mxu0 0
    %563 = vmatpush1.bf16.msra.mxu0 0
    %564 = vmatprep.subr.bf16.mxu0 0
    %565 = vmatpush1.bf16.msra.mxu0 0
    %566 = vmatprep.subr.bf16.mxu0 0
    %567 = vmatpush1.bf16.msra.mxu0 0
    %568 = vmatprep.subr.bf16.mxu0 0
    %569 = vmatpush1.bf16.msra.mxu0 0
    %570 = vmatprep.subr.bf16.mxu0 0
    %571 = vmatpush1.bf16.msra.mxu0 0
    %572 = vmatprep.subr.bf16.mxu0 0
    %573 = vmatpush1.bf16.msra.mxu0 0
    %574 = vmatprep.subr.bf16.mxu0 0
    %575 = vmatpush1.bf16.msra.mxu0 0
    %576 = vmatprep.subr.bf16.mxu0 0
    %577 = vmatpush1.bf16.msra.mxu0 0
    %578 = vmatprep.mubr.bf16.mxu0 0
    %579 = vmatmul.mubr.bf16.gmra.mrb[0].mxu0 %v541
    %v580 = vpop.f32.mrb[0].mxu0
    %v581 = vadd.f32 0.0, %v580
    %v582 = vpop.f32.mrb[0].mxu0
    %v583 = vpop.f32.mrb[0].mxu0
    %v584 = vpop.f32.mrb[0].mxu0
    %585 = vdwg.mxu0
    %587 = vrot.lane.b32.xlu0 %v357, 8
    %v588 = vpop.permute.xlu0 %587
    %591 = vrot.lane.b32.xlu0 %v469, 16
    %v592 = vpop.permute.xlu0 %591
    %595 = vrot.lane.b32.xlu0 %v581, 24
    %v596 = vpop.permute.xlu0 %595
    %v598 = vsel %vm135, %v244, %v588
    %vm599 = vcmask 130048
    %v600 = vsel %vm599, %v598, %v592
    %vm601 = vcmask 195584
    %v602 = vsel %vm601, %v600, %v596
    %v603 = vrot.slane %v125, 4
    %v604 = vrot.slane %v126, 4
    %605 = vrot.lane.b32.xlu0 %v604, 96
    %v606 = vpop.permute.xlu0 %605
    %v608 = vsel %vm135, %v603, 0
    %v611 = vsel %vm135, %v606, 0
    %613 = vmatprep.subr.bf16.mxu0 0
    %614 = vmatpush1.bf16.xpose.msra.mxu0 %v611
    %615 = vmatprep.subr.bf16.mxu0 0
    %616 = vmatpush1.bf16.xpose.msra.mxu0 0
    %617 = vmatprep.subr.bf16.mxu0 0
    %618 = vmatpush1.bf16.xpose.msra.mxu0 0
    %619 = vmatprep.subr.bf16.mxu0 0
    %620 = vmatpush1.bf16.xpose.msra.mxu0 0
    %621 = vmatprep.subr.bf16.mxu0 0
    %622 = vmatpush1.bf16.xpose.msra.mxu0 0
    %623 = vmatprep.subr.bf16.mxu0 0
    %624 = vmatpush1.bf16.xpose.msra.mxu0 0
    %625 = vmatprep.subr.bf16.mxu0 0
    %626 = vmatpush1.bf16.xpose.msra.mxu0 0
    %627 = vmatprep.subr.bf16.mxu0 0
    %628 = vmatpush1.bf16.xpose.msra.mxu0 0
    %629 = vmatprep.subr.bf16.mxu0 0
    %630 = vmatpush1.bf16.xpose.msra.mxu0 0
    %631 = vmatprep.subr.bf16.mxu0 0
    %632 = vmatpush1.bf16.xpose.msra.mxu0 0
    %633 = vmatprep.subr.bf16.mxu0 0
    %634 = vmatpush1.bf16.xpose.msra.mxu0 0
    %635 = vmatprep.subr.bf16.mxu0 0
    %636 = vmatpush1.bf16.xpose.msra.mxu0 0
    %637 = vmatprep.subr.bf16.mxu0 0
    %638 = vmatpush1.bf16.xpose.msra.mxu0 0
    %639 = vmatprep.subr.bf16.mxu0 0
    %640 = vmatpush1.bf16.xpose.msra.mxu0 0
    %641 = vmatprep.subr.bf16.mxu0 0
    %642 = vmatpush1.bf16.xpose.msra.mxu0 0
    %643 = vmatprep.subr.bf16.mxu0 0
    %644 = vmatpush1.bf16.xpose.msra.mxu0 0
    %645 = vmatprep.mubr.bf16.mxu0 0
    %646 = vmatmul.mubr.bf16.gmra.mrb[0].mxu0 %v608
    %v647 = vpop.f32.mrb[0].mxu0
    %v648 = vadd.f32 0.0, %v647
    %v649 = vpop.f32.mrb[0].mxu0
    %v650 = vpop.f32.mrb[0].mxu0
    %v651 = vpop.f32.mrb[0].mxu0
    %652 = vdwg.mxu0
    %v653 = vsel %vm131, %v648, -1e+30
    %v654 = vlaneseq
    %v655 = vshrl.u32 %v654, 7
    %v656 = vsub.s32 1, %v655
    %v657 = vrot.slane %v54, %v656
    %v658 = vadd.f32 %v653, %v657
    %v659 = vsel %vm135, %v658, -inf
    %660 = vmax.xlane.f32.xlu0 %v659
    %v661 = vpop.xlane.xlu0 %660
    %v662 = vsub.f32 %v658, %v661
    %v663 = vmul.f32 %v662, 1.442695
    %v664 = vpow.pop %v663
    %v665 = vsel %vm135, %v664, 0.0
    %666 = vadd.xlane.f32.xlu0 %v665
    %v667 = vpop.xlane.xlu0 %666
    %v668 = vrcp.pop %v667
    %v669 = vmul.f32 %v664, %v668
    %v670 = vpack.c.bf16 %v669, %v669
    %671 = vrot.lane.b32.xlu0 %v604, 64
    %v672 = vpop.permute.xlu0 %671
    %v674 = vsel %vm135, %v670, 0
    %v677 = vsel %vm205, %v672, 0
    %679 = vmatprep.subr.bf16.mxu0 0
    %680 = vmatpush1.bf16.msra.mxu0 %v677
    %681 = vmatprep.subr.bf16.mxu0 0
    %682 = vmatpush1.bf16.msra.mxu0 0
    %683 = vmatprep.subr.bf16.mxu0 0
    %684 = vmatpush1.bf16.msra.mxu0 0
    %685 = vmatprep.subr.bf16.mxu0 0
    %686 = vmatpush1.bf16.msra.mxu0 0
    %687 = vmatprep.subr.bf16.mxu0 0
    %688 = vmatpush1.bf16.msra.mxu0 0
    %689 = vmatprep.subr.bf16.mxu0 0
    %690 = vmatpush1.bf16.msra.mxu0 0
    %691 = vmatprep.subr.bf16.mxu0 0
    %692 = vmatpush1.bf16.msra.mxu0 0
    %693 = vmatprep.subr.bf16.mxu0 0
    %694 = vmatpush1.bf16.msra.mxu0 0
    %695 = vmatprep.subr.bf16.mxu0 0
    %696 = vmatpush1.bf16.msra.mxu0 0
    %697 = vmatprep.subr.bf16.mxu0 0
    %698 = vmatpush1.bf16.msra.mxu0 0
    %699 = vmatprep.subr.bf16.mxu0 0
    %700 = vmatpush1.bf16.msra.mxu0 0
    %701 = vmatprep.subr.bf16.mxu0 0
    %702 = vmatpush1.bf16.msra.mxu0 0
    %703 = vmatprep.subr.bf16.mxu0 0
    %704 = vmatpush1.bf16.msra.mxu0 0
    %705 = vmatprep.subr.bf16.mxu0 0
    %706 = vmatpush1.bf16.msra.mxu0 0
    %707 = vmatprep.subr.bf16.mxu0 0
    %708 = vmatpush1.bf16.msra.mxu0 0
    %709 = vmatprep.subr.bf16.mxu0 0
    %710 = vmatpush1.bf16.msra.mxu0 0
    %711 = vmatprep.mubr.bf16.mxu0 0
    %712 = vmatmul.mubr.bf16.gmra.mrb[0].mxu0 %v674
    %v713 = vpop.f32.mrb[0].mxu0
    %v714 = vadd.f32 0.0, %v713
    %v715 = vpop.f32.mrb[0].mxu0
    %v716 = vpop.f32.mrb[0].mxu0
    %v717 = vpop.f32.mrb[0].mxu0
    %718 = vdwg.mxu0
    %719 = vrot.lane.b32.xlu0 %v603, 120
    %v720 = vpop.permute.xlu0 %719
    %721 = vrot.lane.b32.xlu0 %v604, 88
    %v722 = vpop.permute.xlu0 %721
    %v724 = vsel %vm135, %v720, 0
    %v727 = vsel %vm135, %v722, 0
    %729 = vmatprep.subr.bf16.mxu0 0
    %730 = vmatpush1.bf16.xpose.msra.mxu0 %v727
    %731 = vmatprep.subr.bf16.mxu0 0
    %732 = vmatpush1.bf16.xpose.msra.mxu0 0
    %733 = vmatprep.subr.bf16.mxu0 0
    %734 = vmatpush1.bf16.xpose.msra.mxu0 0
    %735 = vmatprep.subr.bf16.mxu0 0
    %736 = vmatpush1.bf16.xpose.msra.mxu0 0
    %737 = vmatprep.subr.bf16.mxu0 0
    %738 = vmatpush1.bf16.xpose.msra.mxu0 0
    %739 = vmatprep.subr.bf16.mxu0 0
    %740 = vmatpush1.bf16.xpose.msra.mxu0 0
    %741 = vmatprep.subr.bf16.mxu0 0
    %742 = vmatpush1.bf16.xpose.msra.mxu0 0
    %743 = vmatprep.subr.bf16.mxu0 0
    %744 = vmatpush1.bf16.xpose.msra.mxu0 0
    %745 = vmatprep.subr.bf16.mxu0 0
    %746 = vmatpush1.bf16.xpose.msra.mxu0 0
    %747 = vmatprep.subr.bf16.mxu0 0
    %748 = vmatpush1.bf16.xpose.msra.mxu0 0
    %749 = vmatprep.subr.bf16.mxu0 0
    %750 = vmatpush1.bf16.xpose.msra.mxu0 0
    %751 = vmatprep.subr.bf16.mxu0 0
    %752 = vmatpush1.bf16.xpose.msra.mxu0 0
    %753 = vmatprep.subr.bf16.mxu0 0
    %754 = vmatpush1.bf16.xpose.msra.mxu0 0
    %755 = vmatprep.subr.bf16.mxu0 0
    %756 = vmatpush1.bf16.xpose.msra.mxu0 0
    %757 = vmatprep.subr.bf16.mxu0 0
    %758 = vmatpush1.bf16.xpose.msra.mxu0 0
    %759 = vmatprep.subr.bf16.mxu0 0
    %760 = vmatpush1.bf16.xpose.msra.mxu0 0
    %761 = vmatprep.mubr.bf16.mxu0 0
    %762 = vmatmul.mubr.bf16.gmra.mrb[0].mxu0 %v724
    %v763 = vpop.f32.mrb[0].mxu0
    %v764 = vadd.f32 0.0, %v763
    %v765 = vpop.f32.mrb[0].mxu0
    %v766 = vpop.f32.mrb[0].mxu0
    %v767 = vpop.f32.mrb[0].mxu0
    %768 = vdwg.mxu0
    %v769 = vsel %vm131, %v764, -1e+30
    %v770 = vadd.f32 %v769, %v657
    %v771 = vsel %vm135, %v770, -inf
    %772 = vmax.xlane.f32.xlu0 %v771
    %v773 = vpop.xlane.xlu0 %772
    %v774 = vsub.f32 %v770, %v773
    %v775 = vmul.f32 %v774, 1.442695
    %v776 = vpow.pop %v775
    %v777 = vsel %vm135, %v776, 0.0
    %778 = vadd.xlane.f32.xlu0 %v777
    %v779 = vpop.xlane.xlu0 %778
    %v780 = vrcp.pop %v779
    %v781 = vmul.f32 %v776, %v780
    %v782 = vpack.c.bf16 %v781, %v781
    %783 = vrot.lane.b32.xlu0 %v604, 56
    %v784 = vpop.permute.xlu0 %783
    %v786 = vsel %vm135, %v782, 0
    %v789 = vsel %vm205, %v784, 0
    %791 = vmatprep.subr.bf16.mxu0 0
    %792 = vmatpush1.bf16.msra.mxu0 %v789
    %793 = vmatprep.subr.bf16.mxu0 0
    %794 = vmatpush1.bf16.msra.mxu0 0
    %795 = vmatprep.subr.bf16.mxu0 0
    %796 = vmatpush1.bf16.msra.mxu0 0
    %797 = vmatprep.subr.bf16.mxu0 0
    %798 = vmatpush1.bf16.msra.mxu0 0
    %799 = vmatprep.subr.bf16.mxu0 0
    %800 = vmatpush1.bf16.msra.mxu0 0
    %801 = vmatprep.subr.bf16.mxu0 0
    %802 = vmatpush1.bf16.msra.mxu0 0
    %803 = vmatprep.subr.bf16.mxu0 0
    %804 = vmatpush1.bf16.msra.mxu0 0
    %805 = vmatprep.subr.bf16.mxu0 0
    %806 = vmatpush1.bf16.msra.mxu0 0
    %807 = vmatprep.subr.bf16.mxu0 0
    %808 = vmatpush1.bf16.msra.mxu0 0
    %809 = vmatprep.subr.bf16.mxu0 0
    %810 = vmatpush1.bf16.msra.mxu0 0
    %811 = vmatprep.subr.bf16.mxu0 0
    %812 = vmatpush1.bf16.msra.mxu0 0
    %813 = vmatprep.subr.bf16.mxu0 0
    %814 = vmatpush1.bf16.msra.mxu0 0
    %815 = vmatprep.subr.bf16.mxu0 0
    %816 = vmatpush1.bf16.msra.mxu0 0
    %817 = vmatprep.subr.bf16.mxu0 0
    %818 = vmatpush1.bf16.msra.mxu0 0
    %819 = vmatprep.subr.bf16.mxu0 0
    %820 = vmatpush1.bf16.msra.mxu0 0
    %821 = vmatprep.subr.bf16.mxu0 0
    %822 = vmatpush1.bf16.msra.mxu0 0
    %823 = vmatprep.mubr.bf16.mxu0 0
    %824 = vmatmul.mubr.bf16.gmra.mrb[0].mxu0 %v786
    %v825 = vpop.f32.mrb[0].mxu0
    %v826 = vadd.f32 0.0, %v825
    %v827 = vpop.f32.mrb[0].mxu0
    %v828 = vpop.f32.mrb[0].mxu0
    %v829 = vpop.f32.mrb[0].mxu0
    %830 = vdwg.mxu0
    %831 = vrot.lane.b32.xlu0 %v603, 112
    %v832 = vpop.permute.xlu0 %831
    %833 = vrot.lane.b32.xlu0 %v604, 80
    %v834 = vpop.permute.xlu0 %833
    %v836 = vsel %vm135, %v832, 0
    %v839 = vsel %vm135, %v834, 0
    %841 = vmatprep.subr.bf16.mxu0 0
    %842 = vmatpush1.bf16.xpose.msra.mxu0 %v839
    %843 = vmatprep.subr.bf16.mxu0 0
    %844 = vmatpush1.bf16.xpose.msra.mxu0 0
    %845 = vmatprep.subr.bf16.mxu0 0
    %846 = vmatpush1.bf16.xpose.msra.mxu0 0
    %847 = vmatprep.subr.bf16.mxu0 0
    %848 = vmatpush1.bf16.xpose.msra.mxu0 0
    %849 = vmatprep.subr.bf16.mxu0 0
    %850 = vmatpush1.bf16.xpose.msra.mxu0 0
    %851 = vmatprep.subr.bf16.mxu0 0
    %852 = vmatpush1.bf16.xpose.msra.mxu0 0
    %853 = vmatprep.subr.bf16.mxu0 0
    %854 = vmatpush1.bf16.xpose.msra.mxu0 0
    %855 = vmatprep.subr.bf16.mxu0 0
    %856 = vmatpush1.bf16.xpose.msra.mxu0 0
    %857 = vmatprep.subr.bf16.mxu0 0
    %858 = vmatpush1.bf16.xpose.msra.mxu0 0
    %859 = vmatprep.subr.bf16.mxu0 0
    %860 = vmatpush1.bf16.xpose.msra.mxu0 0
    %861 = vmatprep.subr.bf16.mxu0 0
    %862 = vmatpush1.bf16.xpose.msra.mxu0 0
    %863 = vmatprep.subr.bf16.mxu0 0
    %864 = vmatpush1.bf16.xpose.msra.mxu0 0
    %865 = vmatprep.subr.bf16.mxu0 0
    %866 = vmatpush1.bf16.xpose.msra.mxu0 0
    %867 = vmatprep.subr.bf16.mxu0 0
    %868 = vmatpush1.bf16.xpose.msra.mxu0 0
    %869 = vmatprep.subr.bf16.mxu0 0
    %870 = vmatpush1.bf16.xpose.msra.mxu0 0
    %871 = vmatprep.subr.bf16.mxu0 0
    %872 = vmatpush1.bf16.xpose.msra.mxu0 0
    %873 = vmatprep.mubr.bf16.mxu0 0
    %874 = vmatmul.mubr.bf16.gmra.mrb[0].mxu0 %v836
    %v875 = vpop.f32.mrb[0].mxu0
    %v876 = vadd.f32 0.0, %v875
    %v877 = vpop.f32.mrb[0].mxu0
    %v878 = vpop.f32.mrb[0].mxu0
    %v879 = vpop.f32.mrb[0].mxu0
    %880 = vdwg.mxu0
    %v881 = vsel %vm131, %v876, -1e+30
    %v882 = vadd.f32 %v881, %v657
    %v883 = vsel %vm135, %v882, -inf
    %884 = vmax.xlane.f32.xlu0 %v883
    %v885 = vpop.xlane.xlu0 %884
    %v886 = vsub.f32 %v882, %v885
    %v887 = vmul.f32 %v886, 1.442695
    %v888 = vpow.pop %v887
    %v889 = vsel %vm135, %v888, 0.0
    %890 = vadd.xlane.f32.xlu0 %v889
    %v891 = vpop.xlane.xlu0 %890
    %v892 = vrcp.pop %v891
    %v893 = vmul.f32 %v888, %v892
    %v894 = vpack.c.bf16 %v893, %v893
    %895 = vrot.lane.b32.xlu0 %v604, 48
    %v896 = vpop.permute.xlu0 %895
    %v898 = vsel %vm135, %v894, 0
    %v901 = vsel %vm205, %v896, 0
    %903 = vmatprep.subr.bf16.mxu0 0
    %904 = vmatpush1.bf16.msra.mxu0 %v901
    %905 = vmatprep.subr.bf16.mxu0 0
    %906 = vmatpush1.bf16.msra.mxu0 0
    %907 = vmatprep.subr.bf16.mxu0 0
    %908 = vmatpush1.bf16.msra.mxu0 0
    %909 = vmatprep.subr.bf16.mxu0 0
    %910 = vmatpush1.bf16.msra.mxu0 0
    %911 = vmatprep.subr.bf16.mxu0 0
    %912 = vmatpush1.bf16.msra.mxu0 0
    %913 = vmatprep.subr.bf16.mxu0 0
    %914 = vmatpush1.bf16.msra.mxu0 0
    %915 = vmatprep.subr.bf16.mxu0 0
    %916 = vmatpush1.bf16.msra.mxu0 0
    %917 = vmatprep.subr.bf16.mxu0 0
    %918 = vmatpush1.bf16.msra.mxu0 0
    %919 = vmatprep.subr.bf16.mxu0 0
    %920 = vmatpush1.bf16.msra.mxu0 0
    %921 = vmatprep.subr.bf16.mxu0 0
    %922 = vmatpush1.bf16.msra.mxu0 0
    %923 = vmatprep.subr.bf16.mxu0 0
    %924 = vmatpush1.bf16.msra.mxu0 0
    %925 = vmatprep.subr.bf16.mxu0 0
    %926 = vmatpush1.bf16.msra.mxu0 0
    %927 = vmatprep.subr.bf16.mxu0 0
    %928 = vmatpush1.bf16.msra.mxu0 0
    %929 = vmatprep.subr.bf16.mxu0 0
    %930 = vmatpush1.bf16.msra.mxu0 0
    %931 = vmatprep.subr.bf16.mxu0 0
    %932 = vmatpush1.bf16.msra.mxu0 0
    %933 = vmatprep.subr.bf16.mxu0 0
    %934 = vmatpush1.bf16.msra.mxu0 0
    %935 = vmatprep.mubr.bf16.mxu0 0
    %936 = vmatmul.mubr.bf16.gmra.mrb[0].mxu0 %v898
    %v937 = vpop.f32.mrb[0].mxu0
    %v938 = vadd.f32 0.0, %v937
    %v939 = vpop.f32.mrb[0].mxu0
    %v940 = vpop.f32.mrb[0].mxu0
    %v941 = vpop.f32.mrb[0].mxu0
    %942 = vdwg.mxu0
    %943 = vrot.lane.b32.xlu0 %v603, 104
    %v944 = vpop.permute.xlu0 %943
    %945 = vrot.lane.b32.xlu0 %v604, 72
    %v946 = vpop.permute.xlu0 %945
    %v948 = vsel %vm135, %v944, 0
    %v951 = vsel %vm135, %v946, 0
    %953 = vmatprep.subr.bf16.mxu0 0
    %954 = vmatpush1.bf16.xpose.msra.mxu0 %v951
    %955 = vmatprep.subr.bf16.mxu0 0
    %956 = vmatpush1.bf16.xpose.msra.mxu0 0
    %957 = vmatprep.subr.bf16.mxu0 0
    %958 = vmatpush1.bf16.xpose.msra.mxu0 0
    %959 = vmatprep.subr.bf16.mxu0 0
    %960 = vmatpush1.bf16.xpose.msra.mxu0 0
    %961 = vmatprep.subr.bf16.mxu0 0
    %962 = vmatpush1.bf16.xpose.msra.mxu0 0
    %963 = vmatprep.subr.bf16.mxu0 0
    %964 = vmatpush1.bf16.xpose.msra.mxu0 0
    %965 = vmatprep.subr.bf16.mxu0 0
    %966 = vmatpush1.bf16.xpose.msra.mxu0 0
    %967 = vmatprep.subr.bf16.mxu0 0
    %968 = vmatpush1.bf16.xpose.msra.mxu0 0
    %969 = vmatprep.subr.bf16.mxu0 0
    %970 = vmatpush1.bf16.xpose.msra.mxu0 0
    %971 = vmatprep.subr.bf16.mxu0 0
    %972 = vmatpush1.bf16.xpose.msra.mxu0 0
    %973 = vmatprep.subr.bf16.mxu0 0
    %974 = vmatpush1.bf16.xpose.msra.mxu0 0
    %975 = vmatprep.subr.bf16.mxu0 0
    %976 = vmatpush1.bf16.xpose.msra.mxu0 0
    %977 = vmatprep.subr.bf16.mxu0 0
    %978 = vmatpush1.bf16.xpose.msra.mxu0 0
    %979 = vmatprep.subr.bf16.mxu0 0
    %980 = vmatpush1.bf16.xpose.msra.mxu0 0
    %981 = vmatprep.subr.bf16.mxu0 0
    %982 = vmatpush1.bf16.xpose.msra.mxu0 0
    %983 = vmatprep.subr.bf16.mxu0 0
    %984 = vmatpush1.bf16.xpose.msra.mxu0 0
    %985 = vmatprep.mubr.bf16.mxu0 0
    %986 = vmatmul.mubr.bf16.gmra.mrb[0].mxu0 %v948
    %v987 = vpop.f32.mrb[0].mxu0
    %v988 = vadd.f32 0.0, %v987
    %v989 = vpop.f32.mrb[0].mxu0
    %v990 = vpop.f32.mrb[0].mxu0
    %v991 = vpop.f32.mrb[0].mxu0
    %992 = vdwg.mxu0
    %v993 = vsel %vm131, %v988, -1e+30
    %v994 = vadd.f32 %v993, %v657
    %v995 = vsel %vm135, %v994, -inf
    %996 = vmax.xlane.f32.xlu0 %v995
    %v997 = vpop.xlane.xlu0 %996
    %v998 = vsub.f32 %v994, %v997
    %v999 = vmul.f32 %v998, 1.442695
    %v1000 = vpow.pop %v999
    %v1001 = vsel %vm135, %v1000, 0.0
    %1002 = vadd.xlane.f32.xlu0 %v1001
    %v1003 = vpop.xlane.xlu0 %1002
    %v1004 = vrcp.pop %v1003
    %v1005 = vmul.f32 %v1000, %v1004
    %v1006 = vpack.c.bf16 %v1005, %v1005
    %1007 = vrot.lane.b32.xlu0 %v604, 40
    %v1008 = vpop.permute.xlu0 %1007
    %v1010 = vsel %vm135, %v1006, 0
    %v1013 = vsel %vm205, %v1008, 0
    %1015 = vmatprep.subr.bf16.mxu0 0
    %1016 = vmatpush1.bf16.msra.mxu0 %v1013
    %1017 = vmatprep.subr.bf16.mxu0 0
    %1018 = vmatpush1.bf16.msra.mxu0 0
    %1019 = vmatprep.subr.bf16.mxu0 0
    %1020 = vmatpush1.bf16.msra.mxu0 0
    %1021 = vmatprep.subr.bf16.mxu0 0
    %1022 = vmatpush1.bf16.msra.mxu0 0
    %1023 = vmatprep.subr.bf16.mxu0 0
    %1024 = vmatpush1.bf16.msra.mxu0 0
    %1025 = vmatprep.subr.bf16.mxu0 0
    %1026 = vmatpush1.bf16.msra.mxu0 0
    %1027 = vmatprep.subr.bf16.mxu0 0
    %1028 = vmatpush1.bf16.msra.mxu0 0
    %1029 = vmatprep.subr.bf16.mxu0 0
    %1030 = vmatpush1.bf16.msra.mxu0 0
    %1031 = vmatprep.subr.bf16.mxu0 0
    %1032 = vmatpush1.bf16.msra.mxu0 0
    %1033 = vmatprep.subr.bf16.mxu0 0
    %1034 = vmatpush1.bf16.msra.mxu0 0
    %1035 = vmatprep.subr.bf16.mxu0 0
    %1036 = vmatpush1.bf16.msra.mxu0 0
    %1037 = vmatprep.subr.bf16.mxu0 0
    %1038 = vmatpush1.bf16.msra.mxu0 0
    %1039 = vmatprep.subr.bf16.mxu0 0
    %1040 = vmatpush1.bf16.msra.mxu0 0
    %1041 = vmatprep.subr.bf16.mxu0 0
    %1042 = vmatpush1.bf16.msra.mxu0 0
    %1043 = vmatprep.subr.bf16.mxu0 0
    %1044 = vmatpush1.bf16.msra.mxu0 0
    %1045 = vmatprep.subr.bf16.mxu0 0
    %1046 = vmatpush1.bf16.msra.mxu0 0
    %1047 = vmatprep.mubr.bf16.mxu0 0
    %1048 = vmatmul.mubr.bf16.gmra.mrb[0].mxu0 %v1010
    %v1049 = vpop.f32.mrb[0].mxu0
    %v1050 = vadd.f32 0.0, %v1049
    %v1051 = vpop.f32.mrb[0].mxu0
    %v1052 = vpop.f32.mrb[0].mxu0
    %v1053 = vpop.f32.mrb[0].mxu0
    %1054 = vdwg.mxu0
    %1056 = vrot.lane.b32.xlu0 %v826, 8
    %v1057 = vpop.permute.xlu0 %1056
    %1060 = vrot.lane.b32.xlu0 %v938, 16
    %v1061 = vpop.permute.xlu0 %1060
    %1064 = vrot.lane.b32.xlu0 %v1050, 24
    %v1065 = vpop.permute.xlu0 %1064
    %v1067 = vsel %vm135, %v714, %v1057
    %v1068 = vsel %vm599, %v1067, %v1061
    %v1069 = vsel %vm601, %v1068, %v1065
    %1070 = vst.msk [vmem:[#allocation7] sm:$0xff] %vm78, %v602
    %1071 = vst.msk [vmem:[#allocation7 + $0x8] sm:$0xff] %vm78, %v1069
    // Predicated region
    $region26: #{tpu_custom_call.1} parent=1 // pred_check
      _
    $region27: #{tpu_custom_call.1} parent=1 // pred_check_branch
      %1073 = sbr.rel (0) target = $region29
    $region28: #{tpu_custom_call.1} parent=1 // pred_region
      %s1075 = ssub.s32 256, 256
      %1076 = vsyncadd [#allocation4], %s1075
      %s1077 = sshll.u32 [#allocation7], 4
      %s1078 = int_to_ptr.vmem [resolvable:$true] %s1077
      %1083 = dma.vmem_to_hbm [thread:$0]  %s1078, 256, %s4, [#allocation4], 128, 128, 8
    $region29: #{tpu_custom_call.1} parent=1 // pred_fallthru
      _
    // Predicated region
    $region30: #{tpu_custom_call.1} parent=1 // pred_check
      _
    $region31: #{tpu_custom_call.1} parent=1 // pred_check_branch
      %1085 = sbr.rel (0) target = $region33
    $region32: #{tpu_custom_call.1} parent=1 // pred_region
      %1086 = dma.done [#allocation4], 256
    $region33: #{tpu_custom_call.1} parent=1 // pred_fallthru
      _
    %1087 = vsyncpa [#allocation3], 1
    %1088 = vsyncpa [#allocation6], 1
    %1089 = vsyncpa [#allocation4], 1

</llo_original>
